<compile_context>
chip_gen: v6e
topology: v6e:2x2x1
jax: 0.10.0
libtpu: 0.0.40
codegen_flags: <defaults>
</compile_context>

<pallas_src>
import math
from functools import partial

import jax
import jax.numpy as jnp
from jax.experimental import pallas as pl
from jax.experimental.pallas import tpu as pltpu

_MIB = 1024 * 1024


def _round_up(n, m):
    return ((n + m - 1) // m) * m


def _tpu_vmem_and_kind():
    """Best-effort (vmem_capacity_bytes, device_kind) with safe fallbacks."""
    kind = ""
    try:
        kind = (jax.devices()[0].device_kind or "").lower()
    except Exception:
        pass
    vmem_cap = None
    try:
        vmem_cap = int(pltpu.get_tpu_info().vmem_capacity_bytes)
    except Exception:
        vmem_cap = None
    if not vmem_cap or vmem_cap <= 0:
        vmem_cap = 64 * _MIB if "v7" in kind else 128 * _MIB
    return vmem_cap, kind


# ---------------------------------------------------------------------------
# Kernels
# ---------------------------------------------------------------------------

def _ffn_resident_kernel(act_fn, mm_dtype, epi_dtype,
                         x_ref, w1_ref, b1_ref, w2_ref, b2_ref, o_ref):
    """Fused 2-layer MLP on one token tile; both weight matrices VMEM-resident."""
    x = x_ref[...].astype(mm_dtype)                 # in-kernel cast, hidden under MXU
    h = jnp.dot(x, w1_ref[...], preferred_element_type=jnp.float32)
    h = act_fn(h.astype(epi_dtype) + b1_ref[...].astype(epi_dtype))
    y = jnp.dot(h.astype(mm_dtype), w2_ref[...], preferred_element_type=jnp.float32)
    o_ref[...] = act_fn(y + b2_ref[...]).astype(o_ref.dtype)


def _ffn_chunked_kernel(act_fn, mm_dtype, epi_dtype,
                        x_ref, w1_ref, b1_ref, w2_ref, b2_ref, o_ref, acc_ref):
    """Same MLP with the mlp dimension split over an 'arbitrary' grid axis."""
    k = pl.program_id(1)

    @pl.when(k == 0)
    def _():
        acc_ref[...] = jnp.zeros_like(acc_ref)

    x = x_ref[...].astype(mm_dtype)
    h = jnp.dot(x, w1_ref[...], preferred_element_type=jnp.float32)
    h = act_fn(h.astype(epi_dtype) + b1_ref[...].astype(epi_dtype))
    acc_ref[...] += jnp.dot(h.astype(mm_dtype), w2_ref[...],
                            preferred_element_type=jnp.float32)

    @pl.when(k == pl.num_programs(1) - 1)
    def _():
        o_ref[...] = act_fn(acc_ref[...] + b2_ref[...]).astype(o_ref.dtype)


# ---------------------------------------------------------------------------
# Wrapper
# ---------------------------------------------------------------------------

def prepare_ffn_params(w1, b1, w2, b2, matmul_dtype=jnp.bfloat16):
    """Pad to lane-dense (multiples of 128) and cast ONCE, outside the per-call
    path.  w1: [D, mlp], b1: [mlp], w2: [mlp, D], b2: [D].

    Zero padding is numerically inert for any act_fn: padded x columns hit zero
    W1 rows, padded h columns hit zero W2 rows, padded output columns are
    sliced off by the caller."""
    D, mlp = w1.shape
    assert w2.shape == (mlp, D)
    Dp = _round_up(D, 128)
    Pp = _round_up(mlp, 128)
    w1p = jnp.pad(w1, ((0, Dp - D), (0, Pp - mlp))).astype(matmul_dtype)
    w2p = jnp.pad(w2, ((0, Pp - mlp), (0, Dp - D))).astype(matmul_dtype)
    b1p = jnp.pad(jnp.reshape(b1, (1, mlp)), ((0, 0), (0, Pp - mlp))).astype(jnp.float32)
    b2p = jnp.pad(jnp.reshape(b2, (1, D)), ((0, 0), (0, Dp - D))).astype(jnp.float32)
    return {"w1": w1p, "b1": b1p, "w2": w2p, "b2": b2p,
            "dim": D, "mlp_dim": mlp, "matmul_dtype": jnp.dtype(matmul_dtype)}


def feed_forward(x, params, act_fn=jnp.tanh, *, tm=None, mlp_chunk=None,
                 vmem_limit_bytes=None, bf16_epilogue=None, out_dtype=None,
                 max_resident_fraction=0.6):
    """x: [B, S, D]; params from prepare_ffn_params.  Returns [B, S, D]."""
    B, S, D = x.shape
    assert D == params["dim"]
    w1p, b1p, w2p, b2p = params["w1"], params["b1"], params["w2"], params["b2"]
    Dp, Pp = w1p.shape
    mm_dtype = params["matmul_dtype"]
    out_dtype = x.dtype if out_dtype is None else out_dtype
    M = B * S

    vmem_cap, kind = _tpu_vmem_and_kind()
    is_v5_or_older = any(t in kind for t in ("v2", "v3", "v4", "v5"))
    if vmem_limit_bytes is None:
        # ~75% of physical per-TC VMEM: 96 MiB on v5e/v6e, 48 MiB on v7x.
        vmem_limit_bytes = (vmem_cap // 4) * 3
    if bf16_epilogue is None:
        bf16_epilogue = not is_v5_or_older      # bf16 VPU/EUP only on v6e/v7x
    epi_dtype = jnp.bfloat16 if bf16_epilogue else jnp.float32
    if tm is None:
        # v5e: 256 already saturates the 4x128 MXU M dim; v6e: 512 amortizes the
        # ~0.35us per-grid-step overhead; v7x (64 MiB VMEM): stay at 256.
        tm = 256 if (is_v5_or_older or vmem_cap <= 64 * _MIB) else 512

    tm_eff = max(8, min(tm, _round_up(M, 8)))
    Mp = _round_up(M, tm_eff)

    # x: reshape is free; pad only if actually ragged; no wrapper-side cast.
    x2 = x.reshape(M, D)
    if Mp != M or Dp != D:
        x2 = jnp.pad(x2, ((0, Mp - M), (0, Dp - D)))
    grid_m = Mp // tm_eff

    # VMEM footprint estimate for the weight-resident path.
    mm_bytes = jnp.dtype(mm_dtype).itemsize
    resident_bytes = (
        2 * Dp * Pp * mm_bytes                               # W1 + W2 (single-buffered)
        + (Pp + Dp) * 4                                      # biases
        + 2 * tm_eff * Dp * x2.dtype.itemsize                # double-buffered x tile
        + 2 * tm_eff * Dp * jnp.dtype(out_dtype).itemsize    # double-buffered out tile
        + tm_eff * Pp * 4                                    # f32 h intermediate
        + 2 * _MIB                                           # internal scratch headroom
    )
    use_resident = (mlp_chunk is None
                    and resident_bytes <= max_resident_fraction * vmem_limit_bytes)

    if use_resident:
        def build(single_buffer):
            w_kw = {"pipeline_mode": pl.Buffered(1)} if single_buffer else {}
            return pl.pallas_call(
                partial(_ffn_resident_kernel, act_fn, mm_dtype, epi_dtype),
                out_shape=jax.ShapeDtypeStruct((Mp, Dp), out_dtype),
                grid_spec=pltpu.PrefetchScalarGridSpec(
                    num_scalar_prefetch=0,
                    grid=(grid_m,),
                    in_specs=[
                        pl.BlockSpec((tm_eff, Dp), lambda i: (i, 0)),        # streamed x
                        pl.BlockSpec((Dp, Pp), lambda i: (0, 0), **w_kw),    # W1 resident
                        pl.BlockSpec((1, Pp), lambda i: (0, 0), **w_kw),     # b1 resident
                        pl.BlockSpec((Pp, Dp), lambda i: (0, 0), **w_kw),    # W2 resident
                        pl.BlockSpec((1, Dp), lambda i: (0, 0), **w_kw),     # b2 resident
                    ],
                    out_specs=pl.BlockSpec((tm_eff, Dp), lambda i: (i, 0)),
                ),
                compiler_params=pltpu.CompilerParams(
                    dimension_semantics=("parallel",),
                    vmem_limit_bytes=vmem_limit_bytes,
                ),
            )

        try:
            out = build(single_buffer=True)(x2, w1p, b1p, w2p, b2p)
        except Exception:
            # Fallback if Buffered(1) is rejected by this jax/Mosaic version.
            out = build(single_buffer=False)(x2, w1p, b1p, w2p, b2p)
    else:
        # mlp-chunked path: bounds VMEM on v7x / large mlp_dim.
        if mlp_chunk is None:
            mlp_chunk = 512
        pc = min(_round_up(mlp_chunk, 128), Pp)
        while Pp % pc != 0:      # Pp is a multiple of 128, so this terminates at 128
            pc -= 128
        grid_k = Pp // pc
        out = pl.pallas_call(
            partial(_ffn_chunked_kernel, act_fn, mm_dtype, epi_dtype),
            out_shape=jax.ShapeDtypeStruct((Mp, Dp), out_dtype),
            grid_spec=pltpu.PrefetchScalarGridSpec(
                num_scalar_prefetch=0,
                grid=(grid_m, grid_k),
                in_specs=[
                    pl.BlockSpec((tm_eff, Dp), lambda i, k: (i, 0)),  # x (reused over k)
                    pl.BlockSpec((Dp, pc), lambda i, k: (0, k)),      # W1 chunk
                    pl.BlockSpec((1, pc), lambda i, k: (0, k)),       # b1 chunk
                    pl.BlockSpec((pc, Dp), lambda i, k: (k, 0)),      # W2 chunk
                    pl.BlockSpec((1, Dp), lambda i, k: (0, 0)),       # b2
                ],
                out_specs=pl.BlockSpec((tm_eff, Dp), lambda i, k: (i, 0)),
                scratch_shapes=[pltpu.VMEM((tm_eff, Dp), jnp.float32)],
            ),
            compiler_params=pltpu.CompilerParams(
                dimension_semantics=("parallel", "arbitrary"),
                vmem_limit_bytes=vmem_limit_bytes,
            ),
        )(x2, w1p, b1p, w2p, b2p)

    return out[:M, :D].reshape(B, S, D)


def suo_linear_weight(key, in_features, out_features, dtype=jnp.float32):
    """Mirror of scaled_uniform_orthogonal_ (2-D branch) for nn.Linear weights,
    returned already transposed to [in_features, out_features] for x @ W."""
    rescale = max(math.sqrt(in_features / out_features), 1.0)
    return jax.nn.initializers.orthogonal(scale=rescale)(
        key, (in_features, out_features), dtype)


if __name__ == "__main__":
    B, S, DIM, MLP = 2, 8, 32, 64
    act_fn = jnp.tanh

    key = jax.random.PRNGKey(0)
    kx, k1, k2, k3, k4 = jax.random.split(key, 5)

    x = jax.random.normal(kx, (B, S, DIM), dtype=jnp.float32)
    w1 = suo_linear_weight(k1, DIM, MLP)          # [D, mlp]
    b1 = jnp.zeros((MLP,), dtype=jnp.float32)     # zero bias (per module init)
    w2 = suo_linear_weight(k2, MLP, DIM)          # [mlp, D]
    b2 = jnp.zeros((DIM,), dtype=jnp.float32)

    def ref_f32(xx, W1, B1, W2, B2):
        h = act_fn(xx.reshape(-1, W1.shape[0]) @ W1 + B1)
        return act_fn(h @ W2 + B2).reshape(xx.shape[0], xx.shape[1], -1)

    # Pad/cast once, outside the per-call path (weight-resident path).
    params = prepare_ffn_params(w1, b1, w2, b2)
    out = jax.block_until_ready(feed_forward(x, params, act_fn=act_fn))
    assert out.shape == (B, S, DIM)

    ref = ref_f32(x, w1, b1, w2, b2)
    assert jnp.allclose(out, ref, atol=5e-2, rtol=5e-2), "mismatch vs f32 reference"

    # Tighter check vs bf16-matmul-matched (f32-epilogue) reference.
    bf16 = jnp.bfloat16
    h_m = act_fn(jnp.dot(x.reshape(-1, DIM).astype(bf16), w1.astype(bf16),
                         preferred_element_type=jnp.float32) + b1)
    y_m = act_fn(jnp.dot(h_m.astype(bf16), w2.astype(bf16),
                         preferred_element_type=jnp.float32) + b2)
    assert jnp.allclose(out, y_m.reshape(B, S, DIM), atol=2e-2, rtol=2e-2), \
        "mismatch vs bf16-matched reference"

    # Also exercise the mlp-chunked fallback (v7x path) at a small shape.
    MLP2 = 256
    w1b = suo_linear_weight(k3, DIM, MLP2)
    w2b = suo_linear_weight(k4, MLP2, DIM)
    b1b = jnp.zeros((MLP2,), jnp.float32)
    b2b = jnp.zeros((DIM,), jnp.float32)
    params2 = prepare_ffn_params(w1b, b1b, w2b, b2b)
    out2 = jax.block_until_ready(
        feed_forward(x, params2, act_fn=act_fn, mlp_chunk=128))   # 2 mlp chunks
    ref2 = ref_f32(x, w1b, b1b, w2b, b2b)
    assert jnp.allclose(out2, ref2, atol=5e-2, rtol=5e-2), "chunked path mismatch"

    print("KERNEL_OK")
</pallas_src>

<mosaic_0001>
module attributes {stable_mosaic.version = 11 : i64} {
  func.func @_ffn_resident_kernel(%arg0: i32, %arg1: memref<16x128xf32, #tpu.memory_space<vmem>>, %arg2: memref<128x128xbf16, #tpu.memory_space<vmem>>, %arg3: memref<1x128xf32, #tpu.memory_space<vmem>>, %arg4: memref<128x128xbf16, #tpu.memory_space<vmem>>, %arg5: memref<1x128xf32, #tpu.memory_space<vmem>>, %arg6: memref<16x128xf32, #tpu.memory_space<vmem>>) attributes {dimension_semantics = [#tpu.dimension_semantics<parallel>], iteration_bounds = array<i64: 1>, scalar_prefetch = 0 : i64, scratch_operands = 0 : i64, tpu.core_type = #tpu.core_type<tc>, window_params = [{transform_indices = @transform_0, window_bounds = array<i64: 16, 128>}, {pipeline_mode = #tpu.pipeline_mode<synchronous>, transform_indices = @transform_1, window_bounds = array<i64: 128, 128>}, {pipeline_mode = #tpu.pipeline_mode<synchronous>, transform_indices = @transform_2, window_bounds = array<i64: 1, 128>}, {pipeline_mode = #tpu.pipeline_mode<synchronous>, transform_indices = @transform_3, window_bounds = array<i64: 128, 128>}, {pipeline_mode = #tpu.pipeline_mode<synchronous>, transform_indices = @transform_4, window_bounds = array<i64: 1, 128>}, {transform_indices = @transform_5, window_bounds = array<i64: 16, 128>}]} {
    %c0 = arith.constant 0 : index
    %c0_0 = arith.constant 0 : index
    %0 = vector.load %arg1[%c0, %c0_0] : memref<16x128xf32, #tpu.memory_space<vmem>>, vector<16x128xf32>
    %1 = arith.truncf %0 : vector<16x128xf32> to vector<16x128xbf16>
    %c0_1 = arith.constant 0 : index
    %c0_2 = arith.constant 0 : index
    %2 = vector.load %arg2[%c0_1, %c0_2] : memref<128x128xbf16, #tpu.memory_space<vmem>>, vector<128x128xbf16>
    %cst = arith.constant dense<0.000000e+00> : vector<16x128xf32>
    %3 = tpu.matmul %1, %2, %cst {dimension_numbers = #tpu.dot_dimension_numbers<[1], [0], [0], [1], [0, 0, 1, 1], [], []>} : vector<16x128xbf16>, vector<128x128xbf16>, vector<16x128xf32> -> vector<16x128xf32>
    %4 = arith.truncf %3 : vector<16x128xf32> to vector<16x128xbf16>
    %c0_3 = arith.constant 0 : index
    %c0_4 = arith.constant 0 : index
    %5 = vector.load %arg3[%c0_3, %c0_4] : memref<1x128xf32, #tpu.memory_space<vmem>>, vector<1x128xf32>
    %6 = arith.truncf %5 : vector<1x128xf32> to vector<1x128xbf16>
    %7 = vector.broadcast %6 : vector<1x128xbf16> to vector<16x128xbf16>
    %8 = arith.addf %4, %7 : vector<16x128xbf16>
    %9 = math.tanh %8 : vector<16x128xbf16>
    %c0_5 = arith.constant 0 : index
    %c0_6 = arith.constant 0 : index
    %10 = vector.load %arg4[%c0_5, %c0_6] : memref<128x128xbf16, #tpu.memory_space<vmem>>, vector<128x128xbf16>
    %cst_7 = arith.constant dense<0.000000e+00> : vector<16x128xf32>
    %11 = tpu.matmul %9, %10, %cst_7 {dimension_numbers = #tpu.dot_dimension_numbers<[1], [0], [0], [1], [0, 0, 1, 1], [], []>} : vector<16x128xbf16>, vector<128x128xbf16>, vector<16x128xf32> -> vector<16x128xf32>
    %c0_8 = arith.constant 0 : index
    %c0_9 = arith.constant 0 : index
    %12 = vector.load %arg5[%c0_8, %c0_9] : memref<1x128xf32, #tpu.memory_space<vmem>>, vector<1x128xf32>
    %13 = vector.broadcast %12 : vector<1x128xf32> to vector<16x128xf32>
    %14 = arith.addf %11, %13 : vector<16x128xf32>
    %15 = math.tanh %14 : vector<16x128xf32>
    %c0_10 = arith.constant 0 : index
    %c0_11 = arith.constant 0 : index
    %16 = vector.load %arg6[%c0_10, %c0_11] : memref<16x128xf32, #tpu.memory_space<vmem>>, vector<16x128xf32>
    tpu.vector_store %arg6[%c0_10, %c0_11], %15 {strides = array<i32>} : memref<16x128xf32, #tpu.memory_space<vmem>>, vector<16x128xf32>,
    return
  }
  func.func @transform_0(%arg0: i32) -> (i32, i32) {
    %c0_i32 = arith.constant 0 : i32
    %c0_i32_0 = arith.constant 0 : i32
    return %arg0, %c0_i32 : i32, i32
  }
  func.func @transform_1(%arg0: i32) -> (i32, i32) {
    %c0_i32 = arith.constant 0 : i32
    %c0_i32_0 = arith.constant 0 : i32
    %c0_i32_1 = arith.constant 0 : i32
    return %c0_i32, %c0_i32_0 : i32, i32
  }
  func.func @transform_2(%arg0: i32) -> (i32, i32) {
    %c0_i32 = arith.constant 0 : i32
    %c0_i32_0 = arith.constant 0 : i32
    %c0_i32_1 = arith.constant 0 : i32
    return %c0_i32, %c0_i32_0 : i32, i32
  }
  func.func @transform_3(%arg0: i32) -> (i32, i32) {
    %c0_i32 = arith.constant 0 : i32
    %c0_i32_0 = arith.constant 0 : i32
    %c0_i32_1 = arith.constant 0 : i32
    return %c0_i32, %c0_i32_0 : i32, i32
  }
  func.func @transform_4(%arg0: i32) -> (i32, i32) {
    %c0_i32 = arith.constant 0 : i32
    %c0_i32_0 = arith.constant 0 : i32
    %c0_i32_1 = arith.constant 0 : i32
    return %c0_i32, %c0_i32_0 : i32, i32
  }
  func.func @transform_5(%arg0: i32) -> (i32, i32) {
    %c0_i32 = arith.constant 0 : i32
    %c0_i32_0 = arith.constant 0 : i32
    return %arg0, %c0_i32 : i32, i32
  }
}

module attributes {stable_mosaic.version = 11 : i64} {
  func.func @_ffn_resident_kernel(%arg0: i32, %arg1: memref<16x128xf32, #tpu.memory_space<vmem>>, %arg2: memref<128x128xbf16, #tpu.memory_space<vmem>>, %arg3: memref<1x128xf32, #tpu.memory_space<vmem>>, %arg4: memref<128x128xbf16, #tpu.memory_space<vmem>>, %arg5: memref<1x128xf32, #tpu.memory_space<vmem>>, %arg6: memref<16x128xf32, #tpu.memory_space<vmem>>) attributes {dimension_semantics = [#tpu.dimension_semantics<parallel>], iteration_bounds = array<i64: 1>, scalar_prefetch = 0 : i64, scratch_operands = 0 : i64, tpu.core_type = #tpu.core_type<tc>, window_params = [{transform_indices = @transform_0, window_bounds = array<i64: 16, 128>}, {pipeline_mode = #tpu.pipeline_mode<synchronous>, transform_indices = @transform_1, window_bounds = array<i64: 128, 128>}, {pipeline_mode = #tpu.pipeline_mode<synchronous>, transform_indices = @transform_2, window_bounds = array<i64: 1, 128>}, {pipeline_mode = #tpu.pipeline_mode<synchronous>, transform_indices = @transform_3, window_bounds = array<i64: 128, 128>}, {pipeline_mode = #tpu.pipeline_mode<synchronous>, transform_indices = @transform_4, window_bounds = array<i64: 1, 128>}, {transform_indices = @transform_5, window_bounds = array<i64: 16, 128>}]} {
    %c0 = arith.constant 0 : index
    %c0_0 = arith.constant 0 : index
    %0 = vector.load %arg1[%c0, %c0_0] : memref<16x128xf32, #tpu.memory_space<vmem>>, vector<16x128xf32>
    %1 = arith.truncf %0 : vector<16x128xf32> to vector<16x128xbf16>
    %c0_1 = arith.constant 0 : index
    %c0_2 = arith.constant 0 : index
    %2 = vector.load %arg2[%c0_1, %c0_2] : memref<128x128xbf16, #tpu.memory_space<vmem>>, vector<128x128xbf16>
    %cst = arith.constant dense<0.000000e+00> : vector<16x128xf32>
    %3 = tpu.matmul %1, %2, %cst {dimension_numbers = #tpu.dot_dimension_numbers<[1], [0], [0], [1], [0, 0, 1, 1], [], []>} : vector<16x128xbf16>, vector<128x128xbf16>, vector<16x128xf32> -> vector<16x128xf32>
    %4 = arith.truncf %3 : vector<16x128xf32> to vector<16x128xbf16>
    %c0_3 = arith.constant 0 : index
    %c0_4 = arith.constant 0 : index
    %5 = vector.load %arg3[%c0_3, %c0_4] : memref<1x128xf32, #tpu.memory_space<vmem>>, vector<1x128xf32>
    %6 = arith.truncf %5 : vector<1x128xf32> to vector<1x128xbf16>
    %7 = vector.broadcast %6 : vector<1x128xbf16> to vector<16x128xbf16>
    %8 = arith.addf %4, %7 : vector<16x128xbf16>
    %9 = math.tanh %8 : vector<16x128xbf16>
    %c0_5 = arith.constant 0 : index
    %c0_6 = arith.constant 0 : index
    %10 = vector.load %arg4[%c0_5, %c0_6] : memref<128x128xbf16, #tpu.memory_space<vmem>>, vector<128x128xbf16>
    %cst_7 = arith.constant dense<0.000000e+00> : vector<16x128xf32>
    %11 = tpu.matmul %9, %10, %cst_7 {dimension_numbers = #tpu.dot_dimension_numbers<[1], [0], [0], [1], [0, 0, 1, 1], [], []>} : vector<16x128xbf16>, vector<128x128xbf16>, vector<16x128xf32> -> vector<16x128xf32>
    %c0_8 = arith.constant 0 : index
    %c0_9 = arith.constant 0 : index
    %12 = vector.load %arg5[%c0_8, %c0_9] : memref<1x128xf32, #tpu.memory_space<vmem>>, vector<1x128xf32>
    %13 = vector.broadcast %12 : vector<1x128xf32> to vector<16x128xf32>
    %14 = arith.addf %11, %13 : vector<16x128xf32>
    %15 = math.tanh %14 : vector<16x128xf32>
    %c0_10 = arith.constant 0 : index
    %c0_11 = arith.constant 0 : index
    %16 = vector.load %arg6[%c0_10, %c0_11] : memref<16x128xf32, #tpu.memory_space<vmem>>, vector<16x128xf32>
    tpu.vector_store %arg6[%c0_10, %c0_11], %15 {strides = array<i32>} : memref<16x128xf32, #tpu.memory_space<vmem>>, vector<16x128xf32>,
    return
  }
  func.func @transform_0(%arg0: i32) -> (i32, i32) {
    %c0_i32 = arith.constant 0 : i32
    %c0_i32_0 = arith.constant 0 : i32
    return %arg0, %c0_i32 : i32, i32
  }
  func.func @transform_1(%arg0: i32) -> (i32, i32) {
    %c0_i32 = arith.constant 0 : i32
    %c0_i32_0 = arith.constant 0 : i32
    %c0_i32_1 = arith.constant 0 : i32
    return %c0_i32, %c0_i32_0 : i32, i32
  }
  func.func @transform_2(%arg0: i32) -> (i32, i32) {
    %c0_i32 = arith.constant 0 : i32
    %c0_i32_0 = arith.constant 0 : i32
    %c0_i32_1 = arith.constant 0 : i32
    return %c0_i32, %c0_i32_0 : i32, i32
  }
  func.func @transform_3(%arg0: i32) -> (i32, i32) {
    %c0_i32 = arith.constant 0 : i32
    %c0_i32_0 = arith.constant 0 : i32
    %c0_i32_1 = arith.constant 0 : i32
    return %c0_i32, %c0_i32_0 : i32, i32
  }
  func.func @transform_4(%arg0: i32) -> (i32, i32) {
    %c0_i32 = arith.constant 0 : i32
    %c0_i32_0 = arith.constant 0 : i32
    %c0_i32_1 = arith.constant 0 : i32
    return %c0_i32, %c0_i32_0 : i32, i32
  }
  func.func @transform_5(%arg0: i32) -> (i32, i32) {
    %c0_i32 = arith.constant 0 : i32
    %c0_i32_0 = arith.constant 0 : i32
    return %arg0, %c0_i32 : i32, i32
  }
}

</mosaic_0001>

<llo_original>
// kernel: tpu_custom_call.1
$region0: #{tpu_custom_call.1}
  #allocation0 [shape = 'u32[]', space=smem, size = 0x4, offset = 0x4, fixed_abs, tag = 'smem constant byte address 0x4 - core index']
  #allocation1 [shape = 'u32[144,128]{1,0:T(1,128)}', space=vmem, size = 0x12000, scoped, tag = 'internal scratch']
  %s0 = inlined_call_operand.hbm [shape: f32[16,128], index: 0, kind: input, shape index: {}]
  %s1 = inlined_call_operand.hbm [shape: bf16[128,128], index: 1, kind: input, shape index: {}]
  %s2 = inlined_call_operand.vmem [shape: f32[1,128], index: 2, kind: input, shape index: {}]
  %s3 = inlined_call_operand.hbm [shape: bf16[128,128], index: 3, kind: input, shape index: {}]
  %s4 = inlined_call_operand.vmem [shape: f32[1,128], index: 4, kind: input, shape index: {}]
  %s5 = inlined_call_operand.hbm [shape: f32[16,128], index: 5, kind: output, shape index: {}]
  %s6 = sld [smem:[#allocation0]]
  $region42: #{tpu_custom_call.1} parent=0
    _
  %s8 = ssub.s32 1, %s6
  %s9 = scalar_select 0, %s8, %s6
  $region1: #{tpu_custom_call.1} parent=0
    #allocation2 [shape = 'u8[8192]{0}', space=vmem, size = 0x2000, scoped, tag = 'input window, operand 0, single buffered']
    #allocation3 [shape = 's32[1]{0}', space=sflag, size = 0x4, scoped, tag = 'scoped memory for tpu_custom_call.1']
    #allocation4 [shape = 's32[1]{0}', space=sflag, size = 0x4, scoped, tag = 'scoped memory for tpu_custom_call.1']
    #allocation5 [shape = 'u8[32768]{0}', space=vmem, size = 0x8000, scoped, tag = 'input window, operand 1, single buffered']
    #allocation6 [shape = 's32[1]{0}', space=sflag, size = 0x4, scoped, tag = 'scoped memory for tpu_custom_call.1']
    #allocation7 [shape = 'u8[32768]{0}', space=vmem, size = 0x8000, scoped, tag = 'input window, operand 3, single buffered']
    #allocation8 [shape = 'u8[8192]{0}', space=vmem, size = 0x2000, scoped, tag = 'output window, operand 0, single buffered']
    %10 = vsyncpa [#allocation3], 0
    %11 = vsyncpa [#allocation6], 0
    %12 = vsyncpa [#allocation4], 0
    // Predicated region
    $region2: #{tpu_custom_call.1} parent=1 // pred_check
      _
    $region3: #{tpu_custom_call.1} parent=1 // pred_check_branch
      %14 = sbr.rel (0) target = $region5
    $region4: #{tpu_custom_call.1} parent=1 // pred_region
      %s16 = ssub.s32 256, 256
      %17 = vsyncadd [#allocation3], %s16
      %s18 = sshll.u32 [#allocation2], 4
      %s19 = int_to_ptr.vmem [resolvable:$true] %s18
      %24 = dma.hbm_to_vmem [thread:$0]  %s0, 256, %s19, [#allocation3], 128, 128, 8
    $region5: #{tpu_custom_call.1} parent=1 // pred_fallthru
      _
    // Predicated region
    $region6: #{tpu_custom_call.1} parent=1 // pred_check
      _
    $region7: #{tpu_custom_call.1} parent=1 // pred_check_branch
      %26 = sbr.rel (0) target = $region9
    $region8: #{tpu_custom_call.1} parent=1 // pred_region
      %s28 = ssub.s32 1024, 1024
      %29 = vsyncadd [#allocation6], %s28
      %s30 = sshll.u32 [#allocation5], 4
      %s31 = int_to_ptr.vmem [resolvable:$true] %s30
      %36 = dma.hbm_to_vmem [thread:$0]  %s1, 1024, %s31, [#allocation6], 64, 64, 4
    $region9: #{tpu_custom_call.1} parent=1 // pred_fallthru
      _
    // Predicated region
    $region10: #{tpu_custom_call.1} parent=1 // pred_check
      _
    $region11: #{tpu_custom_call.1} parent=1 // pred_check_branch
      %38 = sbr.rel (0) target = $region13
    $region12: #{tpu_custom_call.1} parent=1 // pred_region
      _
    $region13: #{tpu_custom_call.1} parent=1 // pred_fallthru
      _
    // Predicated region
    $region14: #{tpu_custom_call.1} parent=1 // pred_check
      _
    $region15: #{tpu_custom_call.1} parent=1 // pred_check_branch
      %40 = sbr.rel (0) target = $region17
    $region16: #{tpu_custom_call.1} parent=1 // pred_region
      %s42 = ssub.s32 1024, 1024
      %43 = vsyncadd [#allocation6], %s42
      %s44 = sshll.u32 [#allocation7], 4
      %s45 = int_to_ptr.vmem [resolvable:$true] %s44
      %50 = dma.hbm_to_vmem [thread:$0]  %s3, 1024, %s45, [#allocation6], 64, 64, 4
    $region17: #{tpu_custom_call.1} parent=1 // pred_fallthru
      _
    // Predicated region
    $region18: #{tpu_custom_call.1} parent=1 // pred_check
      _
    $region19: #{tpu_custom_call.1} parent=1 // pred_check_branch
      %52 = sbr.rel (0) target = $region21
    $region20: #{tpu_custom_call.1} parent=1 // pred_region
      _
    $region21: #{tpu_custom_call.1} parent=1 // pred_fallthru
      _
    // Predicated region
    $region22: #{tpu_custom_call.1} parent=1 // pred_check
      _
    $region23: #{tpu_custom_call.1} parent=1 // pred_check_branch
      %54 = sbr.rel (0) target = $region25
    $region24: #{tpu_custom_call.1} parent=1 // pred_region
      %55 = dma.done [#allocation3], 256
    $region25: #{tpu_custom_call.1} parent=1 // pred_fallthru
      _
    // Predicated region
    $region26: #{tpu_custom_call.1} parent=1 // pred_check
      _
    $region27: #{tpu_custom_call.1} parent=1 // pred_check_branch
      %57 = sbr.rel (0) target = $region29
    $region28: #{tpu_custom_call.1} parent=1 // pred_region
      %58 = dma.done [#allocation6], 1024
    $region29: #{tpu_custom_call.1} parent=1 // pred_fallthru
      _
    // Predicated region
    $region30: #{tpu_custom_call.1} parent=1 // pred_check
      _
    $region31: #{tpu_custom_call.1} parent=1 // pred_check_branch
      %60 = sbr.rel (0) target = $region33
    $region32: #{tpu_custom_call.1} parent=1 // pred_region
      %61 = dma.done [#allocation6], 1024
    $region33: #{tpu_custom_call.1} parent=1 // pred_fallthru
      _
    %v63 = vld [vmem:[#allocation2] sm:$0xff]
    %v64 = vld [vmem:[#allocation2 + $0x8] sm:$0xff]
    %v65 = vpack.c.bf16 %v64, %v63
    %v66 = vld [vmem:[#allocation5] sm:$0xf]
    %v67 = vld [vmem:[#allocation5 + $0x4] sm:$0xf]
    %v68 = vld [vmem:[#allocation5 + $0x8] sm:$0xf]
    %v69 = vld [vmem:[#allocation5 + $0xc] sm:$0xf]
    %v70 = vld [vmem:[#allocation5 + $0x10] sm:$0xf]
    %v71 = vld [vmem:[#allocation5 + $0x14] sm:$0xf]
    %v72 = vld [vmem:[#allocation5 + $0x18] sm:$0xf]
    %v73 = vld [vmem:[#allocation5 + $0x1c] sm:$0xf]
    %v74 = vld [vmem:[#allocation5 + $0x20] sm:$0xf]
    %v75 = vld [vmem:[#allocation5 + $0x24] sm:$0xf]
    %v76 = vld [vmem:[#allocation5 + $0x28] sm:$0xf]
    %v77 = vld [vmem:[#allocation5 + $0x2c] sm:$0xf]
    %v78 = vld [vmem:[#allocation5 + $0x30] sm:$0xf]
    %v79 = vld [vmem:[#allocation5 + $0x34] sm:$0xf]
    %v80 = vld [vmem:[#allocation5 + $0x38] sm:$0xf]
    %v81 = vld [vmem:[#allocation5 + $0x3c] sm:$0xf]
    %v98 = vunpack.c.l.b16 %v66
    %v99 = vunpack.c.l.b16 %v67
    %v100 = vunpack.c.l.b16 %v68
    %v101 = vunpack.c.l.b16 %v69
    %v102 = vunpack.c.l.b16 %v70
    %v103 = vunpack.c.l.b16 %v71
    %v104 = vunpack.c.l.b16 %v72
    %v105 = vunpack.c.l.b16 %v73
    %v106 = vunpack.c.l.b16 %v74
    %v107 = vunpack.c.l.b16 %v75
    %v108 = vunpack.c.l.b16 %v76
    %v109 = vunpack.c.l.b16 %v77
    %v110 = vunpack.c.l.b16 %v78
    %v111 = vunpack.c.l.b16 %v79
    %v112 = vunpack.c.l.b16 %v80
    %v113 = vunpack.c.l.b16 %v81
    %v114 = vpack.c.b16 %v99, %v98
    %v115 = vpack.c.b16 %v101, %v100
    %v116 = vpack.c.b16 %v103, %v102
    %v117 = vpack.c.b16 %v105, %v104
    %v118 = vpack.c.b16 %v107, %v106
    %v119 = vpack.c.b16 %v109, %v108
    %v120 = vpack.c.b16 %v111, %v110
    %v121 = vpack.c.b16 %v113, %v112
    %130 = vmatprep.subr.bf16.mxu0 0
    %131 = vmatpush1.bf16.msra.mxu0 %v121
    %132 = vmatprep.subr.bf16.mxu0 0
    %133 = vmatpush1.bf16.msra.mxu0 %v120
    %134 = vmatprep.subr.bf16.mxu0 0
    %135 = vmatpush1.bf16.msra.mxu0 %v119
    %136 = vmatprep.subr.bf16.mxu0 0
    %137 = vmatpush1.bf16.msra.mxu0 %v118
    %138 = vmatprep.subr.bf16.mxu0 0
    %139 = vmatpush1.bf16.msra.mxu0 %v117
    %140 = vmatprep.subr.bf16.mxu0 0
    %141 = vmatpush1.bf16.msra.mxu0 %v116
    %142 = vmatprep.subr.bf16.mxu0 0
    %143 = vmatpush1.bf16.msra.mxu0 %v115
    %144 = vmatprep.subr.bf16.mxu0 0
    %145 = vmatpush1.bf16.msra.mxu0 %v114
    %146 = vmatprep.subr.bf16.mxu0 0
    %147 = vmatpush2.bf16.msra.mxu0 0
    %148 = vmatprep.subr.bf16.mxu0 0
    %149 = vmatpush2.bf16.msra.mxu0 0
    %150 = vmatprep.subr.bf16.mxu0 0
    %151 = vmatpush2.bf16.msra.mxu0 0
    %152 = vmatprep.subr.bf16.mxu0 0
    %153 = vmatpush2.bf16.msra.mxu0 0
    %154 = vmatprep.subr.bf16.mxu0 0
    %155 = vmatpush2.bf16.msra.mxu0 0
    %156 = vmatprep.subr.bf16.mxu0 0
    %157 = vmatpush2.bf16.msra.mxu0 0
    %158 = vmatprep.subr.bf16.mxu0 0
    %159 = vmatpush2.bf16.msra.mxu0 0
    %160 = vmatprep.subr.bf16.mxu0 0
    %161 = vmatpush2.bf16.msra.mxu0 0
    %162 = vmatprep.mubr.bf16.mxu0 0
    %163 = vmatmul.mubr.bf16.gmra.mxu0 %v65
    %v164 = vpop.f32.mrf.mxu0
    %v165 = vadd.f32 0.0, %v164
    %v166 = vpop.f32.mrf.mxu0
    %v167 = vpop.f32.mrf.mxu0
    %v168 = vadd.f32 0.0, %v167
    %v169 = vpop.f32.mrf.mxu0
    %170 = vdwg.mxu0
    %v171 = vpack.c.bf16 %v168, %v165
    %v172 = vld [vmem:[%s2] sm:$0x1]
    %v173 = vpack.c.bf16 %v172, %v172
    %v175 = vpack.i.b16 %v173, %v173
    %v177 = vlaneseq
    %v178 = vshrl.u32 %v177, 7
    %v179 = vsub.s32 0, %v178
    %v180 = vrot.slane %v175, %v179
    %v181 = vadd.bf16 %v171, %v180
    %v182 = vtanh.bf16.pop %v181
    %v183 = vld [vmem:[#allocation7] sm:$0xf]
    %v184 = vld [vmem:[#allocation7 + $0x4] sm:$0xf]
    %v185 = vld [vmem:[#allocation7 + $0x8] sm:$0xf]
    %v186 = vld [vmem:[#allocation7 + $0xc] sm:$0xf]
    %v187 = vld [vmem:[#allocation7 + $0x10] sm:$0xf]
    %v188 = vld [vmem:[#allocation7 + $0x14] sm:$0xf]
    %v189 = vld [vmem:[#allocation7 + $0x18] sm:$0xf]
    %v190 = vld [vmem:[#allocation7 + $0x1c] sm:$0xf]
    %v191 = vld [vmem:[#allocation7 + $0x20] sm:$0xf]
    %v192 = vld [vmem:[#allocation7 + $0x24] sm:$0xf]
    %v193 = vld [vmem:[#allocation7 + $0x28] sm:$0xf]
    %v194 = vld [vmem:[#allocation7 + $0x2c] sm:$0xf]
    %v195 = vld [vmem:[#allocation7 + $0x30] sm:$0xf]
    %v196 = vld [vmem:[#allocation7 + $0x34] sm:$0xf]
    %v197 = vld [vmem:[#allocation7 + $0x38] sm:$0xf]
    %v198 = vld [vmem:[#allocation7 + $0x3c] sm:$0xf]
    %v199 = vld [vmem:[%s4] sm:$0x1]
    %v201 = vlaneseq
    %v202 = vshrl.u32 %v201, 7
    %v203 = vsub.s32 0, %v202
    %v204 = vrot.slane %v199, %v203
    %v222 = vunpack.c.l.b16 %v183
    %v223 = vunpack.c.l.b16 %v184
    %v224 = vunpack.c.l.b16 %v185
    %v225 = vunpack.c.l.b16 %v186
    %v226 = vunpack.c.l.b16 %v187
    %v227 = vunpack.c.l.b16 %v188
    %v228 = vunpack.c.l.b16 %v189
    %v229 = vunpack.c.l.b16 %v190
    %v230 = vunpack.c.l.b16 %v191
    %v231 = vunpack.c.l.b16 %v192
    %v232 = vunpack.c.l.b16 %v193
    %v233 = vunpack.c.l.b16 %v194
    %v234 = vunpack.c.l.b16 %v195
    %v235 = vunpack.c.l.b16 %v196
    %v236 = vunpack.c.l.b16 %v197
    %v237 = vunpack.c.l.b16 %v198
    %v238 = vpack.c.b16 %v223, %v222
    %v239 = vpack.c.b16 %v225, %v224
    %v240 = vpack.c.b16 %v227, %v226
    %v241 = vpack.c.b16 %v229, %v228
    %v242 = vpack.c.b16 %v231, %v230
    %v243 = vpack.c.b16 %v233, %v232
    %v244 = vpack.c.b16 %v235, %v234
    %v245 = vpack.c.b16 %v237, %v236
    %254 = vmatprep.subr.bf16.mxu0 0
    %255 = vmatpush1.bf16.msra.mxu0 %v245
    %256 = vmatprep.subr.bf16.mxu0 0
    %257 = vmatpush1.bf16.msra.mxu0 %v244
    %258 = vmatprep.subr.bf16.mxu0 0
    %259 = vmatpush1.bf16.msra.mxu0 %v243
    %260 = vmatprep.subr.bf16.mxu0 0
    %261 = vmatpush1.bf16.msra.mxu0 %v242
    %262 = vmatprep.subr.bf16.mxu0 0
    %263 = vmatpush1.bf16.msra.mxu0 %v241
    %264 = vmatprep.subr.bf16.mxu0 0
    %265 = vmatpush1.bf16.msra.mxu0 %v240
    %266 = vmatprep.subr.bf16.mxu0 0
    %267 = vmatpush1.bf16.msra.mxu0 %v239
    %268 = vmatprep.subr.bf16.mxu0 0
    %269 = vmatpush1.bf16.msra.mxu0 %v238
    %270 = vmatprep.subr.bf16.mxu0 0
    %271 = vmatpush2.bf16.msra.mxu0 0
    %272 = vmatprep.subr.bf16.mxu0 0
    %273 = vmatpush2.bf16.msra.mxu0 0
    %274 = vmatprep.subr.bf16.mxu0 0
    %275 = vmatpush2.bf16.msra.mxu0 0
    %276 = vmatprep.subr.bf16.mxu0 0
    %277 = vmatpush2.bf16.msra.mxu0 0
    %278 = vmatprep.subr.bf16.mxu0 0
    %279 = vmatpush2.bf16.msra.mxu0 0
    %280 = vmatprep.subr.bf16.mxu0 0
    %281 = vmatpush2.bf16.msra.mxu0 0
    %282 = vmatprep.subr.bf16.mxu0 0
    %283 = vmatpush2.bf16.msra.mxu0 0
    %284 = vmatprep.subr.bf16.mxu0 0
    %285 = vmatpush2.bf16.msra.mxu0 0
    %286 = vmatprep.mubr.bf16.mxu0 0
    %287 = vmatmul.mubr.bf16.gmra.mxu0 %v182
    %v288 = vpop.f32.mrf.mxu0
    %v289 = vadd.f32 %v204, %v288
    %v290 = vpop.f32.mrf.mxu0
    %v291 = vpop.f32.mrf.mxu0
    %v292 = vadd.f32 %v204, %v291
    %v293 = vpop.f32.mrf.mxu0
    %294 = vdwg.mxu0
    %v295 = vtanh.pop %v289
    %v296 = vtanh.pop %v292
    %297 = vst [vmem:[#allocation8] sm:$0xff] %v295
    %298 = vst [vmem:[#allocation8 + $0x8] sm:$0xff] %v296
    // Predicated region
    $region34: #{tpu_custom_call.1} parent=1 // pred_check
      _
    $region35: #{tpu_custom_call.1} parent=1 // pred_check_branch
      %300 = sbr.rel (0) target = $region37
    $region36: #{tpu_custom_call.1} parent=1 // pred_region
      %s302 = ssub.s32 256, 256
      %303 = vsyncadd [#allocation4], %s302
      %s304 = sshll.u32 [#allocation8], 4
      %s305 = int_to_ptr.vmem [resolvable:$true] %s304
      %310 = dma.vmem_to_hbm [thread:$0]  %s305, 256, %s5, [#allocation4], 128, 128, 8
    $region37: #{tpu_custom_call.1} parent=1 // pred_fallthru
      _
    // Predicated region
    $region38: #{tpu_custom_call.1} parent=1 // pred_check
      _
    $region39: #{tpu_custom_call.1} parent=1 // pred_check_branch
      %312 = sbr.rel (0) target = $region41
    $region40: #{tpu_custom_call.1} parent=1 // pred_region
      %313 = dma.done [#allocation4], 256
    $region41: #{tpu_custom_call.1} parent=1 // pred_fallthru
      _
    %314 = vsyncpa [#allocation3], 1
    %315 = vsyncpa [#allocation6], 1
    %316 = vsyncpa [#allocation4], 1

// kernel: tpu_custom_call.1
$region0: #{tpu_custom_call.1}
  #allocation0 [shape = 'u32[]', space=smem, size = 0x4, offset = 0x4, fixed_abs, tag = 'smem constant byte address 0x4 - core index']
  #allocation1 [shape = 'u32[144,128]{1,0:T(1,128)}', space=vmem, size = 0x12000, scoped, tag = 'internal scratch']
  %s0 = inlined_call_operand.hbm [shape: f32[16,128], index: 0, kind: input, shape index: {}]
  %s1 = inlined_call_operand.hbm [shape: bf16[128,128], index: 1, kind: input, shape index: {}]
  %s2 = inlined_call_operand.vmem [shape: f32[1,128], index: 2, kind: input, shape index: {}]
  %s3 = inlined_call_operand.hbm [shape: bf16[128,128], index: 3, kind: input, shape index: {}]
  %s4 = inlined_call_operand.vmem [shape: f32[1,128], index: 4, kind: input, shape index: {}]
  %s5 = inlined_call_operand.hbm [shape: f32[16,128], index: 5, kind: output, shape index: {}]
  %s6 = sld [smem:[#allocation0]]
  $region42: #{tpu_custom_call.1} parent=0
    _
  %s8 = ssub.s32 1, %s6
  %s9 = scalar_select 0, %s8, %s6
  $region1: #{tpu_custom_call.1} parent=0
    #allocation2 [shape = 'u8[8192]{0}', space=vmem, size = 0x2000, scoped, tag = 'input window, operand 0, single buffered']
    #allocation3 [shape = 's32[1]{0}', space=sflag, size = 0x4, scoped, tag = 'scoped memory for tpu_custom_call.1']
    #allocation4 [shape = 's32[1]{0}', space=sflag, size = 0x4, scoped, tag = 'scoped memory for tpu_custom_call.1']
    #allocation5 [shape = 'u8[32768]{0}', space=vmem, size = 0x8000, scoped, tag = 'input window, operand 1, single buffered']
    #allocation6 [shape = 's32[1]{0}', space=sflag, size = 0x4, scoped, tag = 'scoped memory for tpu_custom_call.1']
    #allocation7 [shape = 'u8[32768]{0}', space=vmem, size = 0x8000, scoped, tag = 'input window, operand 3, single buffered']
    #allocation8 [shape = 'u8[8192]{0}', space=vmem, size = 0x2000, scoped, tag = 'output window, operand 0, single buffered']
    %10 = vsyncpa [#allocation3], 0
    %11 = vsyncpa [#allocation6], 0
    %12 = vsyncpa [#allocation4], 0
    // Predicated region
    $region2: #{tpu_custom_call.1} parent=1 // pred_check
      _
    $region3: #{tpu_custom_call.1} parent=1 // pred_check_branch
      %14 = sbr.rel (0) target = $region5
    $region4: #{tpu_custom_call.1} parent=1 // pred_region
      %s16 = ssub.s32 256, 256
      %17 = vsyncadd [#allocation3], %s16
      %s18 = sshll.u32 [#allocation2], 4
      %s19 = int_to_ptr.vmem [resolvable:$true] %s18
      %24 = dma.hbm_to_vmem [thread:$0]  %s0, 256, %s19, [#allocation3], 128, 128, 8
    $region5: #{tpu_custom_call.1} parent=1 // pred_fallthru
      _
    // Predicated region
    $region6: #{tpu_custom_call.1} parent=1 // pred_check
      _
    $region7: #{tpu_custom_call.1} parent=1 // pred_check_branch
      %26 = sbr.rel (0) target = $region9
    $region8: #{tpu_custom_call.1} parent=1 // pred_region
      %s28 = ssub.s32 1024, 1024
      %29 = vsyncadd [#allocation6], %s28
      %s30 = sshll.u32 [#allocation5], 4
      %s31 = int_to_ptr.vmem [resolvable:$true] %s30
      %36 = dma.hbm_to_vmem [thread:$0]  %s1, 1024, %s31, [#allocation6], 64, 64, 4
    $region9: #{tpu_custom_call.1} parent=1 // pred_fallthru
      _
    // Predicated region
    $region10: #{tpu_custom_call.1} parent=1 // pred_check
      _
    $region11: #{tpu_custom_call.1} parent=1 // pred_check_branch
      %38 = sbr.rel (0) target = $region13
    $region12: #{tpu_custom_call.1} parent=1 // pred_region
      _
    $region13: #{tpu_custom_call.1} parent=1 // pred_fallthru
      _
    // Predicated region
    $region14: #{tpu_custom_call.1} parent=1 // pred_check
      _
    $region15: #{tpu_custom_call.1} parent=1 // pred_check_branch
      %40 = sbr.rel (0) target = $region17
    $region16: #{tpu_custom_call.1} parent=1 // pred_region
      %s42 = ssub.s32 1024, 1024
      %43 = vsyncadd [#allocation6], %s42
      %s44 = sshll.u32 [#allocation7], 4
      %s45 = int_to_ptr.vmem [resolvable:$true] %s44
      %50 = dma.hbm_to_vmem [thread:$0]  %s3, 1024, %s45, [#allocation6], 64, 64, 4
    $region17: #{tpu_custom_call.1} parent=1 // pred_fallthru
      _
    // Predicated region
    $region18: #{tpu_custom_call.1} parent=1 // pred_check
      _
    $region19: #{tpu_custom_call.1} parent=1 // pred_check_branch
      %52 = sbr.rel (0) target = $region21
    $region20: #{tpu_custom_call.1} parent=1 // pred_region
      _
    $region21: #{tpu_custom_call.1} parent=1 // pred_fallthru
      _
    // Predicated region
    $region22: #{tpu_custom_call.1} parent=1 // pred_check
      _
    $region23: #{tpu_custom_call.1} parent=1 // pred_check_branch
      %54 = sbr.rel (0) target = $region25
    $region24: #{tpu_custom_call.1} parent=1 // pred_region
      %55 = dma.done [#allocation3], 256
    $region25: #{tpu_custom_call.1} parent=1 // pred_fallthru
      _
    // Predicated region
    $region26: #{tpu_custom_call.1} parent=1 // pred_check
      _
    $region27: #{tpu_custom_call.1} parent=1 // pred_check_branch
      %57 = sbr.rel (0) target = $region29
    $region28: #{tpu_custom_call.1} parent=1 // pred_region
      %58 = dma.done [#allocation6], 1024
    $region29: #{tpu_custom_call.1} parent=1 // pred_fallthru
      _
    // Predicated region
    $region30: #{tpu_custom_call.1} parent=1 // pred_check
      _
    $region31: #{tpu_custom_call.1} parent=1 // pred_check_branch
      %60 = sbr.rel (0) target = $region33
    $region32: #{tpu_custom_call.1} parent=1 // pred_region
      %61 = dma.done [#allocation6], 1024
    $region33: #{tpu_custom_call.1} parent=1 // pred_fallthru
      _
    %v63 = vld [vmem:[#allocation2] sm:$0xff]
    %v64 = vld [vmem:[#allocation2 + $0x8] sm:$0xff]
    %v65 = vpack.c.bf16 %v64, %v63
    %v66 = vld [vmem:[#allocation5] sm:$0xf]
    %v67 = vld [vmem:[#allocation5 + $0x4] sm:$0xf]
    %v68 = vld [vmem:[#allocation5 + $0x8] sm:$0xf]
    %v69 = vld [vmem:[#allocation5 + $0xc] sm:$0xf]
    %v70 = vld [vmem:[#allocation5 + $0x10] sm:$0xf]
    %v71 = vld [vmem:[#allocation5 + $0x14] sm:$0xf]
    %v72 = vld [vmem:[#allocation5 + $0x18] sm:$0xf]
    %v73 = vld [vmem:[#allocation5 + $0x1c] sm:$0xf]
    %v74 = vld [vmem:[#allocation5 + $0x20] sm:$0xf]
    %v75 = vld [vmem:[#allocation5 + $0x24] sm:$0xf]
    %v76 = vld [vmem:[#allocation5 + $0x28] sm:$0xf]
    %v77 = vld [vmem:[#allocation5 + $0x2c] sm:$0xf]
    %v78 = vld [vmem:[#allocation5 + $0x30] sm:$0xf]
    %v79 = vld [vmem:[#allocation5 + $0x34] sm:$0xf]
    %v80 = vld [vmem:[#allocation5 + $0x38] sm:$0xf]
    %v81 = vld [vmem:[#allocation5 + $0x3c] sm:$0xf]
    %v98 = vunpack.c.l.b16 %v66
    %v99 = vunpack.c.l.b16 %v67
    %v100 = vunpack.c.l.b16 %v68
    %v101 = vunpack.c.l.b16 %v69
    %v102 = vunpack.c.l.b16 %v70
    %v103 = vunpack.c.l.b16 %v71
    %v104 = vunpack.c.l.b16 %v72
    %v105 = vunpack.c.l.b16 %v73
    %v106 = vunpack.c.l.b16 %v74
    %v107 = vunpack.c.l.b16 %v75
    %v108 = vunpack.c.l.b16 %v76
    %v109 = vunpack.c.l.b16 %v77
    %v110 = vunpack.c.l.b16 %v78
    %v111 = vunpack.c.l.b16 %v79
    %v112 = vunpack.c.l.b16 %v80
    %v113 = vunpack.c.l.b16 %v81
    %v114 = vpack.c.b16 %v99, %v98
    %v115 = vpack.c.b16 %v101, %v100
    %v116 = vpack.c.b16 %v103, %v102
    %v117 = vpack.c.b16 %v105, %v104
    %v118 = vpack.c.b16 %v107, %v106
    %v119 = vpack.c.b16 %v109, %v108
    %v120 = vpack.c.b16 %v111, %v110
    %v121 = vpack.c.b16 %v113, %v112
    %130 = vmatprep.subr.bf16.mxu0 0
    %131 = vmatpush1.bf16.msra.mxu0 %v121
    %132 = vmatprep.subr.bf16.mxu0 0
    %133 = vmatpush1.bf16.msra.mxu0 %v120
    %134 = vmatprep.subr.bf16.mxu0 0
    %135 = vmatpush1.bf16.msra.mxu0 %v119
    %136 = vmatprep.subr.bf16.mxu0 0
    %137 = vmatpush1.bf16.msra.mxu0 %v118
    %138 = vmatprep.subr.bf16.mxu0 0
    %139 = vmatpush1.bf16.msra.mxu0 %v117
    %140 = vmatprep.subr.bf16.mxu0 0
    %141 = vmatpush1.bf16.msra.mxu0 %v116
    %142 = vmatprep.subr.bf16.mxu0 0
    %143 = vmatpush1.bf16.msra.mxu0 %v115
    %144 = vmatprep.subr.bf16.mxu0 0
    %145 = vmatpush1.bf16.msra.mxu0 %v114
    %146 = vmatprep.subr.bf16.mxu0 0
    %147 = vmatpush2.bf16.msra.mxu0 0
    %148 = vmatprep.subr.bf16.mxu0 0
    %149 = vmatpush2.bf16.msra.mxu0 0
    %150 = vmatprep.subr.bf16.mxu0 0
    %151 = vmatpush2.bf16.msra.mxu0 0
    %152 = vmatprep.subr.bf16.mxu0 0
    %153 = vmatpush2.bf16.msra.mxu0 0
    %154 = vmatprep.subr.bf16.mxu0 0
    %155 = vmatpush2.bf16.msra.mxu0 0
    %156 = vmatprep.subr.bf16.mxu0 0
    %157 = vmatpush2.bf16.msra.mxu0 0
    %158 = vmatprep.subr.bf16.mxu0 0
    %159 = vmatpush2.bf16.msra.mxu0 0
    %160 = vmatprep.subr.bf16.mxu0 0
    %161 = vmatpush2.bf16.msra.mxu0 0
    %162 = vmatprep.mubr.bf16.mxu0 0
    %163 = vmatmul.mubr.bf16.gmra.mxu0 %v65
    %v164 = vpop.f32.mrf.mxu0
    %v165 = vadd.f32 0.0, %v164
    %v166 = vpop.f32.mrf.mxu0
    %v167 = vpop.f32.mrf.mxu0
    %v168 = vadd.f32 0.0, %v167
    %v169 = vpop.f32.mrf.mxu0
    %170 = vdwg.mxu0
    %v171 = vpack.c.bf16 %v168, %v165
    %v172 = vld [vmem:[%s2] sm:$0x1]
    %v173 = vpack.c.bf16 %v172, %v172
    %v175 = vpack.i.b16 %v173, %v173
    %v177 = vlaneseq
    %v178 = vshrl.u32 %v177, 7
    %v179 = vsub.s32 0, %v178
    %v180 = vrot.slane %v175, %v179
    %v181 = vadd.bf16 %v171, %v180
    %v182 = vtanh.bf16.pop %v181
    %v183 = vld [vmem:[#allocation7] sm:$0xf]
    %v184 = vld [vmem:[#allocation7 + $0x4] sm:$0xf]
    %v185 = vld [vmem:[#allocation7 + $0x8] sm:$0xf]
    %v186 = vld [vmem:[#allocation7 + $0xc] sm:$0xf]
    %v187 = vld [vmem:[#allocation7 + $0x10] sm:$0xf]
    %v188 = vld [vmem:[#allocation7 + $0x14] sm:$0xf]
    %v189 = vld [vmem:[#allocation7 + $0x18] sm:$0xf]
    %v190 = vld [vmem:[#allocation7 + $0x1c] sm:$0xf]
    %v191 = vld [vmem:[#allocation7 + $0x20] sm:$0xf]
    %v192 = vld [vmem:[#allocation7 + $0x24] sm:$0xf]
    %v193 = vld [vmem:[#allocation7 + $0x28] sm:$0xf]
    %v194 = vld [vmem:[#allocation7 + $0x2c] sm:$0xf]
    %v195 = vld [vmem:[#allocation7 + $0x30] sm:$0xf]
    %v196 = vld [vmem:[#allocation7 + $0x34] sm:$0xf]
    %v197 = vld [vmem:[#allocation7 + $0x38] sm:$0xf]
    %v198 = vld [vmem:[#allocation7 + $0x3c] sm:$0xf]
    %v199 = vld [vmem:[%s4] sm:$0x1]
    %v201 = vlaneseq
    %v202 = vshrl.u32 %v201, 7
    %v203 = vsub.s32 0, %v202
    %v204 = vrot.slane %v199, %v203
    %v222 = vunpack.c.l.b16 %v183
    %v223 = vunpack.c.l.b16 %v184
    %v224 = vunpack.c.l.b16 %v185
    %v225 = vunpack.c.l.b16 %v186
    %v226 = vunpack.c.l.b16 %v187
    %v227 = vunpack.c.l.b16 %v188
    %v228 = vunpack.c.l.b16 %v189
    %v229 = vunpack.c.l.b16 %v190
    %v230 = vunpack.c.l.b16 %v191
    %v231 = vunpack.c.l.b16 %v192
    %v232 = vunpack.c.l.b16 %v193
    %v233 = vunpack.c.l.b16 %v194
    %v234 = vunpack.c.l.b16 %v195
    %v235 = vunpack.c.l.b16 %v196
    %v236 = vunpack.c.l.b16 %v197
    %v237 = vunpack.c.l.b16 %v198
    %v238 = vpack.c.b16 %v223, %v222
    %v239 = vpack.c.b16 %v225, %v224
    %v240 = vpack.c.b16 %v227, %v226
    %v241 = vpack.c.b16 %v229, %v228
    %v242 = vpack.c.b16 %v231, %v230
    %v243 = vpack.c.b16 %v233, %v232
    %v244 = vpack.c.b16 %v235, %v234
    %v245 = vpack.c.b16 %v237, %v236
    %254 = vmatprep.subr.bf16.mxu0 0
    %255 = vmatpush1.bf16.msra.mxu0 %v245
    %256 = vmatprep.subr.bf16.mxu0 0
    %257 = vmatpush1.bf16.msra.mxu0 %v244
    %258 = vmatprep.subr.bf16.mxu0 0
    %259 = vmatpush1.bf16.msra.mxu0 %v243
    %260 = vmatprep.subr.bf16.mxu0 0
    %261 = vmatpush1.bf16.msra.mxu0 %v242
    %262 = vmatprep.subr.bf16.mxu0 0
    %263 = vmatpush1.bf16.msra.mxu0 %v241
    %264 = vmatprep.subr.bf16.mxu0 0
    %265 = vmatpush1.bf16.msra.mxu0 %v240
    %266 = vmatprep.subr.bf16.mxu0 0
    %267 = vmatpush1.bf16.msra.mxu0 %v239
    %268 = vmatprep.subr.bf16.mxu0 0
    %269 = vmatpush1.bf16.msra.mxu0 %v238
    %270 = vmatprep.subr.bf16.mxu0 0
    %271 = vmatpush2.bf16.msra.mxu0 0
    %272 = vmatprep.subr.bf16.mxu0 0
    %273 = vmatpush2.bf16.msra.mxu0 0
    %274 = vmatprep.subr.bf16.mxu0 0
    %275 = vmatpush2.bf16.msra.mxu0 0
    %276 = vmatprep.subr.bf16.mxu0 0
    %277 = vmatpush2.bf16.msra.mxu0 0
    %278 = vmatprep.subr.bf16.mxu0 0
    %279 = vmatpush2.bf16.msra.mxu0 0
    %280 = vmatprep.subr.bf16.mxu0 0
    %281 = vmatpush2.bf16.msra.mxu0 0
    %282 = vmatprep.subr.bf16.mxu0 0
    %283 = vmatpush2.bf16.msra.mxu0 0
    %284 = vmatprep.subr.bf16.mxu0 0
    %285 = vmatpush2.bf16.msra.mxu0 0
    %286 = vmatprep.mubr.bf16.mxu0 0
    %287 = vmatmul.mubr.bf16.gmra.mxu0 %v182
    %v288 = vpop.f32.mrf.mxu0
    %v289 = vadd.f32 %v204, %v288
    %v290 = vpop.f32.mrf.mxu0
    %v291 = vpop.f32.mrf.mxu0
    %v292 = vadd.f32 %v204, %v291
    %v293 = vpop.f32.mrf.mxu0
    %294 = vdwg.mxu0
    %v295 = vtanh.pop %v289
    %v296 = vtanh.pop %v292
    %297 = vst [vmem:[#allocation8] sm:$0xff] %v295
    %298 = vst [vmem:[#allocation8 + $0x8] sm:$0xff] %v296
    // Predicated region
    $region34: #{tpu_custom_call.1} parent=1 // pred_check
      _
    $region35: #{tpu_custom_call.1} parent=1 // pred_check_branch
      %300 = sbr.rel (0) target = $region37
    $region36: #{tpu_custom_call.1} parent=1 // pred_region
      %s302 = ssub.s32 256, 256
      %303 = vsyncadd [#allocation4], %s302
      %s304 = sshll.u32 [#allocation8], 4
      %s305 = int_to_ptr.vmem [resolvable:$true] %s304
      %310 = dma.vmem_to_hbm [thread:$0]  %s305, 256, %s5, [#allocation4], 128, 128, 8
    $region37: #{tpu_custom_call.1} parent=1 // pred_fallthru
      _
    // Predicated region
    $region38: #{tpu_custom_call.1} parent=1 // pred_check
      _
    $region39: #{tpu_custom_call.1} parent=1 // pred_check_branch
      %312 = sbr.rel (0) target = $region41
    $region40: #{tpu_custom_call.1} parent=1 // pred_region
      %313 = dma.done [#allocation4], 256
    $region41: #{tpu_custom_call.1} parent=1 // pred_fallthru
      _
    %314 = vsyncpa [#allocation3], 1
    %315 = vsyncpa [#allocation6], 1
    %316 = vsyncpa [#allocation4], 1

</llo_original>
